<compile_context>
chip_gen: v6e
topology: v6e:2x2x1
jax: 0.10.0
libtpu: 0.0.40
codegen_flags: <defaults>
</compile_context>

<pallas_src>
import functools

import jax
import jax.numpy as jnp
from jax import lax
from jax.experimental import pallas as pl
from jax.experimental.pallas import tpu as pltpu


def _disparity_partials_kernel(disp_ref, gt_ref, out_ref, colT_ref, *, f, W):
    """One (batch, h-tile) step: f x f max-pool of gt (/f), smooth-L1 vs disp,
    accumulate [sum_sl1, sum_gt, sum_gt^2] into this batch's output row."""
    h = pl.program_id(1)

    @pl.when(h == 0)
    def _():
        out_ref[...] = jnp.zeros_like(out_ref)

    Wf = W * f

    # gt block is (1, tile_h, f*W*f): row r of the f x f window of pooled row i
    # is the contiguous lane slab [r*Wf, (r+1)*Wf) of kernel row i (free
    # row-major reshape done in the wrapper). Row-pool with static contiguous
    # lane slices.
    x = gt_ref[0].astype(jnp.float32)                   # (tile_h, f*W*f)
    rowp = x[:, 0:Wf]
    for r in range(1, f):
        rowp = jnp.maximum(rowp, x[:, r * Wf:(r + 1) * Wf])   # (tile_h, Wf)

    # Column-pool: transpose so the f-grouping sits on the sublane axis, then
    # max-combine f sublane-strided slices read back from VMEM scratch.
    colT_ref[...] = rowp.T                              # (Wf, tile_h)
    colp = colT_ref[pl.ds(0, W, stride=f), :]           # (W, tile_h)
    for c in range(1, f):
        colp = jnp.maximum(colp, colT_ref[pl.ds(c, W, stride=f), :])

    # downsample_disparity: max_pool2d(kernel=stride=f) / f
    gt_ds = colp.T * (1.0 / f)                          # (tile_h, W)

    disp = disp_ref[0].astype(jnp.float32)              # (tile_h, W)

    # SmoothL1Loss(reduction='none'), beta = 1.0
    diff = disp - gt_ds
    ad = jnp.abs(diff)
    sl1 = jnp.where(ad < 1.0, 0.5 * diff * diff, ad - 0.5)

    s_sl1 = jnp.sum(sl1)
    s_gt = jnp.sum(gt_ds)
    s_gt2 = jnp.sum(gt_ds * gt_ds)

    # Place the three partial sums in lanes 0/1/2 of the per-batch output row.
    lane = lax.broadcasted_iota(jnp.int32, out_ref.shape, 2)
    row = jnp.where(lane == 0, s_sl1, 0.0)
    row = jnp.where(lane == 1, s_gt, row)
    row = jnp.where(lane == 2, s_gt2, row)
    out_ref[...] += row


def _pick_tile_h(H, W, f, target_bytes=2 << 20):
    """Largest tile height (multiple of 8 dividing H, or H itself) whose gt
    block (tile_h, f*W*f) f32 stays under target_bytes, so double-buffered
    blocks fit comfortably in scoped VMEM on v5e/v6e/v7x."""
    row_bytes = 4 * f * W * f
    cands = [t for t in range(8, H, 8) if H % t == 0] + [H]
    fitting = [t for t in cands if t * row_bytes <= target_bytes]
    return max(fitting) if fitting else min(cands)


def disparity_loss(disparity, disparity_gt, *, max_disparity, stdmean_scaled,
                   right=False, low_range_div=None, tile_h=None):
    B, H, W = disparity.shape
    f = disparity_gt.shape[2] // W

    # Kept for parity with the PyTorch forward; it never feeds the loss there either.
    md = max_disparity / f
    if low_range_div is not None:
        md = md / low_range_div
    del md, right

    if tile_h is None:
        tile_h = _pick_tile_h(H, W, f)
    assert H % tile_h == 0 and (tile_h % 8 == 0 or tile_h == H), (H, tile_h)

    # Free (row-major, metadata-only) reshape: no transposed HBM copy of gt.
    gt_r = disparity_gt.reshape(B, H, f * W * f)

    kernel = functools.partial(_disparity_partials_kernel, f=f, W=W)

    partials = pl.pallas_call(
        kernel,
        out_shape=jax.ShapeDtypeStruct((B, 1, 128), jnp.float32),
        grid_spec=pltpu.PrefetchScalarGridSpec(
            num_scalar_prefetch=0,
            grid=(B, H // tile_h),
            in_specs=[
                pl.BlockSpec((1, tile_h, W), lambda b, h: (b, h, 0)),
                pl.BlockSpec((1, tile_h, f * W * f), lambda b, h: (b, h, 0)),
            ],
            out_specs=pl.BlockSpec((1, 1, 128), lambda b, h: (b, 0, 0)),
            scratch_shapes=[pltpu.VMEM((W * f, tile_h), jnp.float32)],
        ),
        compiler_params=pltpu.CompilerParams(
            dimension_semantics=("parallel", "arbitrary")),
    )(disparity, gt_r)

    # Scalar epilogue on per-batch partials, all in f32.
    sum_sl1 = partials[:, 0, 0]
    sum_gt = partials[:, 0, 1]
    sum_gt2 = partials[:, 0, 2]

    n = H * W
    mean_loss = sum_sl1 / n
    if stdmean_scaled:
        gt_mean = sum_gt / n
        # torch.std_mean default: unbiased estimator (correction=1)
        gt_var = jnp.maximum(sum_gt2 - n * gt_mean * gt_mean, 0.0) / (n - 1)
        gt_std = jnp.sqrt(gt_var)
        contrib = mean_loss / (gt_mean + 2.0 * gt_std)
    else:
        contrib = mean_loss * f

    # "if torch.sum(gt[b]) < 0.001: continue"
    contrib = jnp.where(sum_gt < 0.001, 0.0, contrib)

    # loss / batch_size (when no batch is valid the sum is 0, so the
    # unconditional division matches the PyTorch early-return exactly)
    loss = jnp.sum(contrib) / B
    return loss.reshape(1).astype(disparity.dtype)


def disparity_loss_ref(disparity, disparity_gt, *, stdmean_scaled):
    """Pure-JAX reference mirroring the PyTorch module (two-pass std)."""
    B, H, W = disparity.shape
    f = disparity_gt.shape[2] // W
    gt = disparity_gt.reshape(B, H, f, W, f).max(axis=(2, 4)) / f
    total = jnp.float32(0.0)
    for b in range(B):
        s = gt[b].sum()
        diff = disparity[b] - gt[b]
        ad = jnp.abs(diff)
        sl1 = jnp.where(ad < 1.0, 0.5 * diff * diff, ad - 0.5)
        ml = sl1.mean()
        if stdmean_scaled:
            c = ml / (gt[b].mean() + 2.0 * jnp.std(gt[b], ddof=1))
        else:
            c = ml * f
        total = total + jnp.where(s < 0.001, 0.0, c)
    return jnp.reshape(total / B, (1,)).astype(disparity.dtype)


if __name__ == "__main__":
    key = jax.random.PRNGKey(0)
    k1, k2 = jax.random.split(key)

    B, H, W, f = 2, 16, 128, 2
    disparity = jax.random.uniform(k1, (B, H, W), jnp.float32, 0.0, 10.0)
    disparity_gt = jax.random.uniform(k2, (B, H * f, W * f), jnp.float32, 0.0, 10.0)
    # Make batch 1 ground-truth empty so the "valid ground truth" gate is exercised.
    disparity_gt = disparity_gt.at[1].set(0.0)

    # rtol=1e-4: the kernel accumulates single-pass sum / sum-of-squares
    # partials over spatial tiles, the reference uses a two-pass std, so
    # rounding differs slightly.
    for stdmean in (True, False):
        out = jax.block_until_ready(
            disparity_loss(disparity, disparity_gt, max_disparity=192,
                           stdmean_scaled=stdmean, tile_h=8))  # 2 h-tiles/batch
        ref = disparity_loss_ref(disparity, disparity_gt, stdmean_scaled=stdmean)
        assert out.shape == (1,)
        assert jnp.allclose(out, ref, rtol=1e-4, atol=1e-6), (stdmean, out, ref)

    # Auto tile-height path (single h-tile at this size).
    out = jax.block_until_ready(
        disparity_loss(disparity, disparity_gt, max_disparity=192,
                       stdmean_scaled=True))
    ref = disparity_loss_ref(disparity, disparity_gt, stdmean_scaled=True)
    assert jnp.allclose(out, ref, rtol=1e-4, atol=1e-6), (out, ref)

    print("KERNEL_OK")
</pallas_src>

<mosaic_0001>
module attributes {stable_mosaic.version = 11 : i64} {
  func.func @_disparity_partials_kernel(%arg0: i32, %arg1: i32, %arg2: memref<1x8x128xf32, #tpu.memory_space<vmem>>, %arg3: memref<1x8x512xf32, #tpu.memory_space<vmem>>, %arg4: memref<1x1x128xf32, #tpu.memory_space<vmem>>, %arg5: memref<256x8xf32, #tpu.memory_space<vmem>>) attributes {dimension_semantics = [#tpu.dimension_semantics<parallel>, #tpu.dimension_semantics<arbitrary>], iteration_bounds = array<i64: 2, 2>, scalar_prefetch = 0 : i64, scratch_operands = 1 : i64, tpu.core_type = #tpu.core_type<tc>, window_params = [{transform_indices = @transform_0, window_bounds = array<i64: 1, 8, 128>}, {transform_indices = @transform_1, window_bounds = array<i64: 1, 8, 512>}, {transform_indices = @transform_2, window_bounds = array<i64: 1, 1, 128>}]} {
    %c0_i32 = arith.constant 0 : i32
    %0 = arith.cmpi eq, %arg1, %c0_i32 : i32
    %1 = arith.extui %0 : i1 to i32
    %c0_i32_0 = arith.constant 0 : i32
    %2 = arith.cmpi ne, %1, %c0_i32_0 : i32
    scf.if %2 {
      %cst_25 = arith.constant 0.000000e+00 : f32
      %58 = vector.broadcast %cst_25 : f32 to vector<1x1x128xf32>
      %c0_26 = arith.constant 0 : index
      %c0_27 = arith.constant 0 : index
      %c0_28 = arith.constant 0 : index
      %59 = vector.load %arg4[%c0_26, %c0_27, %c0_28] : memref<1x1x128xf32, #tpu.memory_space<vmem>>, vector<1x1x128xf32>
      tpu.vector_store %arg4[%c0_26, %c0_27, %c0_28], %58 {strides = array<i32>} : memref<1x1x128xf32, #tpu.memory_space<vmem>>, vector<1x1x128xf32>,
    } else {
    }
    %c0 = arith.constant 0 : index
    %c0_1 = arith.constant 0 : index
    %c0_2 = arith.constant 0 : index
    %3 = vector.load %arg3[%c0, %c0_1, %c0_2] : memref<1x8x512xf32, #tpu.memory_space<vmem>>, vector<1x8x512xf32>
    %4 = vector.shape_cast %3 : vector<1x8x512xf32> to vector<8x512xf32>
    %5 = vector.extract_strided_slice %4 {offsets = [0, 0], sizes = [8, 256], strides = [1, 1]} : vector<8x512xf32> to vector<8x256xf32>
    %6 = vector.extract_strided_slice %4 {offsets = [0, 256], sizes = [8, 256], strides = [1, 1]} : vector<8x512xf32> to vector<8x256xf32>
    %7 = arith.maximumf %5, %6 : vector<8x256xf32>
    %8 = tpu.transpose %7, [1, 0] : vector<8x256xf32> -> vector<256x8xf32>
    %c0_3 = arith.constant 0 : index
    %c0_4 = arith.constant 0 : index
    %9 = vector.load %arg5[%c0_3, %c0_4] : memref<256x8xf32, #tpu.memory_space<vmem>>, vector<256x8xf32>
    tpu.vector_store %arg5[%c0_3, %c0_4], %8 {strides = array<i32>} : memref<256x8xf32, #tpu.memory_space<vmem>>, vector<256x8xf32>,
    %c0_5 = arith.constant 0 : index
    %c0_6 = arith.constant 0 : index
    %10 = tpu.strided_load %arg5[%c0_5, %c0_6] {strides = array<i32: 2, 1>} : memref<256x8xf32, #tpu.memory_space<vmem>>, vector<128x8xf32>
    %c1 = arith.constant 1 : index
    %c0_7 = arith.constant 0 : index
    %11 = tpu.strided_load %arg5[%c1, %c0_7] {strides = array<i32: 2, 1>} : memref<256x8xf32, #tpu.memory_space<vmem>>, vector<128x8xf32>
    %12 = arith.maximumf %10, %11 : vector<128x8xf32>
    %13 = tpu.transpose %12, [1, 0] : vector<128x8xf32> -> vector<8x128xf32>
    %cst = arith.constant 5.000000e-01 : f32
    %14 = vector.broadcast %cst : f32 to vector<8x128xf32>
    %15 = arith.mulf %13, %14 : vector<8x128xf32>
    %c0_8 = arith.constant 0 : index
    %c0_9 = arith.constant 0 : index
    %c0_10 = arith.constant 0 : index
    %16 = vector.load %arg2[%c0_8, %c0_9, %c0_10] : memref<1x8x128xf32, #tpu.memory_space<vmem>>, vector<1x8x128xf32>
    %17 = vector.shape_cast %16 : vector<1x8x128xf32> to vector<8x128xf32>
    %18 = arith.subf %17, %15 : vector<8x128xf32>
    %19 = math.absf %18 : vector<8x128xf32>
    %cst_11 = arith.constant 1.000000e+00 : f32
    %20 = vector.broadcast %cst_11 : f32 to vector<8x128xf32>
    %21 = arith.cmpf olt, %19, %20 : vector<8x128xf32>
    %cst_12 = arith.constant 5.000000e-01 : f32
    %22 = vector.broadcast %cst_12 : f32 to vector<8x128xf32>
    %23 = arith.mulf %22, %18 : vector<8x128xf32>
    %24 = arith.mulf %23, %18 : vector<8x128xf32>
    %cst_13 = arith.constant 5.000000e-01 : f32
    %25 = vector.broadcast %cst_13 : f32 to vector<8x128xf32>
    %26 = arith.subf %19, %25 : vector<8x128xf32>
    %27 = arith.select %21, %24, %26 : vector<8x128xi1>, vector<8x128xf32>
    %28 = vector.shape_cast %27 : vector<8x128xf32> to vector<1x8x128xf32>
    %cst_14 = arith.constant dense<0.000000e+00> : vector<1xf32>
    %29 = vector.multi_reduction <add>, %28, %cst_14 [1, 2] : vector<1x8x128xf32> to vector<1xf32>
    %30 = vector.shape_cast %29 : vector<1xf32> to vector<1x1x1xf32>
    %31 = vector.extract %30[0, 0, 0] : f32 from vector<1x1x1xf32>
    %32 = vector.shape_cast %15 : vector<8x128xf32> to vector<1x8x128xf32>
    %cst_15 = arith.constant dense<0.000000e+00> : vector<1xf32>
    %33 = vector.multi_reduction <add>, %32, %cst_15 [1, 2] : vector<1x8x128xf32> to vector<1xf32>
    %34 = vector.shape_cast %33 : vector<1xf32> to vector<1x1x1xf32>
    %35 = vector.extract %34[0, 0, 0] : f32 from vector<1x1x1xf32>
    %36 = arith.mulf %15, %15 : vector<8x128xf32>
    %37 = vector.shape_cast %36 : vector<8x128xf32> to vector<1x8x128xf32>
    %cst_16 = arith.constant dense<0.000000e+00> : vector<1xf32>
    %38 = vector.multi_reduction <add>, %37, %cst_16 [1, 2] : vector<1x8x128xf32> to vector<1xf32>
    %39 = vector.shape_cast %38 : vector<1xf32> to vector<1x1x1xf32>
    %40 = vector.extract %39[0, 0, 0] : f32 from vector<1x1x1xf32>
    %41 = tpu.iota {dimensions = array<i32: 2>} : vector<1x1x128xi32>
    %c0_i32_17 = arith.constant 0 : i32
    %42 = vector.broadcast %c0_i32_17 : i32 to vector<1x1x128xi32>
    %43 = arith.cmpi eq, %41, %42 : vector<1x1x128xi32>
    %cst_18 = arith.constant 0.000000e+00 : f32
    %44 = vector.broadcast %31 : f32 to vector<1x1x128xf32>
    %45 = vector.broadcast %cst_18 : f32 to vector<1x1x128xf32>
    %46 = arith.select %43, %44, %45 : vector<1x1x128xi1>, vector<1x1x128xf32>
    %c1_i32 = arith.constant 1 : i32
    %47 = vector.broadcast %c1_i32 : i32 to vector<1x1x128xi32>
    %48 = arith.cmpi eq, %41, %47 : vector<1x1x128xi32>
    %49 = vector.broadcast %35 : f32 to vector<1x1x128xf32>
    %50 = arith.select %48, %49, %46 : vector<1x1x128xi1>, vector<1x1x128xf32>
    %c2_i32 = arith.constant 2 : i32
    %51 = vector.broadcast %c2_i32 : i32 to vector<1x1x128xi32>
    %52 = arith.cmpi eq, %41, %51 : vector<1x1x128xi32>
    %53 = vector.broadcast %40 : f32 to vector<1x1x128xf32>
    %54 = arith.select %52, %53, %50 : vector<1x1x128xi1>, vector<1x1x128xf32>
    %c0_19 = arith.constant 0 : index
    %c0_20 = arith.constant 0 : index
    %c0_21 = arith.constant 0 : index
    %55 = vector.load %arg4[%c0_19, %c0_20, %c0_21] : memref<1x1x128xf32, #tpu.memory_space<vmem>>, vector<1x1x128xf32>
    %56 = arith.addf %55, %54 : vector<1x1x128xf32>
    %c0_22 = arith.constant 0 : index
    %c0_23 = arith.constant 0 : index
    %c0_24 = arith.constant 0 : index
    %57 = vector.load %arg4[%c0_22, %c0_23, %c0_24] : memref<1x1x128xf32, #tpu.memory_space<vmem>>, vector<1x1x128xf32>
    tpu.vector_store %arg4[%c0_22, %c0_23, %c0_24], %56 {strides = array<i32>} : memref<1x1x128xf32, #tpu.memory_space<vmem>>, vector<1x1x128xf32>,
    return
  }
  func.func @transform_0(%arg0: i32, %arg1: i32) -> (i32, i32, i32) {
    %c0_i32 = arith.constant 0 : i32
    %c0_i32_0 = arith.constant 0 : i32
    return %arg0, %arg1, %c0_i32 : i32, i32, i32
  }
  func.func @transform_1(%arg0: i32, %arg1: i32) -> (i32, i32, i32) {
    %c0_i32 = arith.constant 0 : i32
    %c0_i32_0 = arith.constant 0 : i32
    return %arg0, %arg1, %c0_i32 : i32, i32, i32
  }
  func.func @transform_2(%arg0: i32, %arg1: i32) -> (i32, i32, i32) {
    %c0_i32 = arith.constant 0 : i32
    %c0_i32_0 = arith.constant 0 : i32
    %c0_i32_1 = arith.constant 0 : i32
    return %arg0, %c0_i32, %c0_i32_0 : i32, i32, i32
  }
}

</mosaic_0001>

<llo_original>
// kernel: tpu_custom_call.1
$region0: #{tpu_custom_call.1}
  #allocation0 [shape = 'u32[]', space=smem, size = 0x4, offset = 0x4, fixed_abs, tag = 'smem constant byte address 0x4 - core index']
  #allocation1 [shape = 'u32[144,128]{1,0:T(1,128)}', space=vmem, size = 0x12000, scoped, tag = 'internal scratch']
  #allocation2 [shape = 'f32[256,8]{1,0:T(8,128)}', space=vmem, size = 0x20000, scoped, tag = 'scratch operand']
  %s0 = inlined_call_operand.hbm [shape: f32[2,16,128], index: 0, kind: input, shape index: {}]
  %s1 = inlined_call_operand.hbm [shape: f32[2,16,512], index: 1, kind: input, shape index: {}]
  %s2 = inlined_call_operand.hbm [shape: f32[2,1,128], index: 2, kind: output, shape index: {}]
  %s3 = sld [smem:[#allocation0]]
  $region53: #{tpu_custom_call.1} parent=0
    _
  %s5 = ssub.s32 1, %s3
  %s6 = scalar_select 0, %s5, %s3
  $region1: #{tpu_custom_call.1} parent=0
    #allocation3 [shape = 'u8[8192]{0}', space=vmem, size = 0x2000, scoped, tag = 'input window, operand 0']
    #allocation4 [shape = 's32[2]{0}', space=sflag, size = 0x8, scoped, tag = 'scoped memory for tpu_custom_call.1']
    #allocation5 [shape = 's32[2]{0}', space=sflag, size = 0x8, scoped, tag = 'scoped memory for tpu_custom_call.1']
    #allocation6 [shape = 'u8[32768]{0}', space=vmem, size = 0x8000, scoped, tag = 'input window, operand 1']
    #allocation7 [shape = 's32[2]{0}', space=sflag, size = 0x8, scoped, tag = 'scoped memory for tpu_custom_call.1']
    #allocation8 [shape = 'u8[1024]{0}', space=vmem, size = 0x400, scoped, tag = 'output window, operand 0']
    %7 = vsyncpa [#allocation4], 0
    %s8 = scalar_lea.sflag [#allocation4], 1
    %9 = vsyncpa %s8, 0
    %10 = vsyncpa [#allocation7], 0
    %s11 = scalar_lea.sflag [#allocation7], 1
    %12 = vsyncpa %s11, 0
    %13 = vsyncpa [#allocation5], 0
    %s14 = scalar_lea.sflag [#allocation5], 1
    %15 = vsyncpa %s14, 0
    loop: start=0, step=1, limit=6
    $region2: #{tpu_custom_call.1} parent=1 // loop_pre_header
      _
    $region3: #{tpu_custom_call.1} parent=1 // loop_header
      %s17 = sphi 0, %s21
      %p18 = scmp.ge.s32.totalorder %s17, 6
      %s24 = sphi 0, %s36
      %s25 = sphi 0, %s32
      %s26 = sphi 0, %s24
      %s27 = sphi 0, %s25
      %s28 = sphi 0, %s26
      %s29 = sphi 0, %s27
      %s41 = sphi 0, %s43
      %s44 = sphi 0, %s41
      %s45 = sphi 0, %s44
      %s61 = sphi 0, %s45
      %s69 = sphi 0, %s71
      %s72 = sphi 0, %s69
      %s73 = sphi 0, %s72
      %s89 = sphi 0, %s73
      %s95 = sphi 0, %s97
      %s98 = sphi 0, %s95
      %s99 = sphi 0, %s98
      %s115 = sphi 0, %s99
    $region4: #{tpu_custom_call.1} parent=1 // loop_header_branch
      %20 = sbr.rel (%p18) target = $region8
    $region5: #{tpu_custom_call.1} parent=1 // loop_body
      %s22 = ssub.s32 %s17, 1
      %s23 = ssub.s32 %s17, 2
      %s30 = sadd.s32 1, %s25
      %p31 = scmp.ge.s32.totalorder %s30, 2
      %s32 = scalar_select %p31, 0, %s30
      %s33 = sadd.s32 1, %s24
      %s34 = scalar_select %p31, %s33, %s24
      %p35 = scmp.ge.s32.totalorder %s34, 2
      %s36 = scalar_select %p35, 0, %s34
      %s37 = ssub.s32 %s24, %s36
      %s38 = ssub.s32 %s25, %s32
      %s39 = sor.u32 %s37, %s38
      %p40 = scmp.eq.s32.totalorder %s39, 0
      %s42 = sadd.s32 %s41, 1
      %s43 = scalar_select %p40, %s41, %s42
      %p46 = pneg %p40
      %p47 = scmp.eq.s32.totalorder %s17, 3
      %p48 = por %p46, %p47
      %p49 = scmp.ne.s32.totalorder %s41, %s44
      %p50 = scmp.eq.s32.totalorder %s17, 0
      %p51 = por %p49, %p50
      %p52 = scmp.ne.s32.totalorder %s41, %s44
      %p53 = scmp.eq.s32.totalorder %s22, 3
      %p54 = por %p52, %p53
      %p55 = scmp.ne.s32.totalorder %s44, %s45
      %p56 = scmp.eq.s32.totalorder %s22, 0
      %p57 = por %p55, %p56
      %p58 = scmp.ne.s32.totalorder %s44, %s45
      %p59 = scmp.eq.s32.totalorder %s23, 3
      %p60 = por %p58, %p59
      %p62 = scmp.ne.s32.totalorder %s45, %s61
      %p63 = scmp.eq.s32.totalorder %s23, 0
      %p64 = por %p62, %p63
      %s65 = ssub.s32 %s24, %s36
      %s66 = ssub.s32 %s25, %s32
      %s67 = sor.u32 %s65, %s66
      %p68 = scmp.eq.s32.totalorder %s67, 0
      %s70 = sadd.s32 %s69, 1
      %s71 = scalar_select %p68, %s69, %s70
      %p74 = pneg %p68
      %p75 = scmp.eq.s32.totalorder %s17, 3
      %p76 = por %p74, %p75
      %p77 = scmp.ne.s32.totalorder %s69, %s72
      %p78 = scmp.eq.s32.totalorder %s17, 0
      %p79 = por %p77, %p78
      %p80 = scmp.ne.s32.totalorder %s69, %s72
      %p81 = scmp.eq.s32.totalorder %s22, 3
      %p82 = por %p80, %p81
      %p83 = scmp.ne.s32.totalorder %s72, %s73
      %p84 = scmp.eq.s32.totalorder %s22, 0
      %p85 = por %p83, %p84
      %p86 = scmp.ne.s32.totalorder %s72, %s73
      %p87 = scmp.eq.s32.totalorder %s23, 3
      %p88 = por %p86, %p87
      %p90 = scmp.ne.s32.totalorder %s73, %s89
      %p91 = scmp.eq.s32.totalorder %s23, 0
      %p92 = por %p90, %p91
      %s93 = ssub.s32 %s24, %s36
      %p94 = scmp.eq.s32.totalorder %s93, 0
      %s96 = sadd.s32 %s95, 1
      %s97 = scalar_select %p94, %s95, %s96
      %p100 = pneg %p94
      %p101 = scmp.eq.s32.totalorder %s17, 3
      %p102 = por %p100, %p101
      %p103 = scmp.ne.s32.totalorder %s95, %s98
      %p104 = scmp.eq.s32.totalorder %s17, 0
      %p105 = por %p103, %p104
      %p106 = scmp.ne.s32.totalorder %s95, %s98
      %p107 = scmp.eq.s32.totalorder %s22, 3
      %p108 = por %p106, %p107
      %p109 = scmp.ne.s32.totalorder %s98, %s99
      %p110 = scmp.eq.s32.totalorder %s22, 0
      %p111 = por %p109, %p110
      %p112 = scmp.ne.s32.totalorder %s98, %s99
      %p113 = scmp.eq.s32.totalorder %s23, 3
      %p114 = por %p112, %p113
      %p116 = scmp.ne.s32.totalorder %s99, %s115
      %p117 = scmp.eq.s32.totalorder %s23, 0
      %p118 = por %p116, %p117
      %p119 = scmp.le.s32.totalorder 1, %s17
      %p120 = scmp.lt.s32.totalorder %s17, 5
      %p121 = pnand %p119, %p120
      %p122 = pneg %p121
      // Predicated region
      $region9: #{tpu_custom_call.1} parent=5 // pred_check
        _
      $region10: #{tpu_custom_call.1} parent=5 // pred_check_branch
        %124 = sbr.rel (%p121) target = $region12
      $region11: #{tpu_custom_call.1} parent=5 // pred_region
        %s125 = ssub.s32 %s17, 1
      $region12: #{tpu_custom_call.1} parent=5 // pred_fallthru
        _
      %p126 = scmp.lt.s32.totalorder %s17, 4
      // Predicated region
      $region13: #{tpu_custom_call.1} parent=5 // pred_check
        %p127 = pneg %p126
      $region14: #{tpu_custom_call.1} parent=5 // pred_check_branch
        %129 = sbr.rel (%p127) target = $region16
      $region15: #{tpu_custom_call.1} parent=5 // pred_region
        // Predicated region
        $region17: #{tpu_custom_call.1} parent=15 // pred_check
          %p130 = pneg %p51
        $region18: #{tpu_custom_call.1} parent=15 // pred_check_branch
          %132 = sbr.rel (%p130) target = $region20
        $region19: #{tpu_custom_call.1} parent=15 // pred_region
          %s133 = sand.u32 %s41, 1
          %s134 = scalar_lea.sflag [#allocation4], %s133
          %s135 = sand.u32 %s41, 1
          %s136 = smul.addr %s135, 8
          %s137 = scalar_lea.vmem [#allocation3], %s136
          %s139 = ssub.s32 128, 128
          %140 = vsyncadd %s134, %s139
          %s141 = smul.addr %s24, 2
          %s142 = sadd.s32 %s25, %s141
          %s143 = smul.addr %s142, 128
          %s144 = scalar_lea.hbm %s0, %s143
          %s146 = sshll.u32 %s137, 4
          %s147 = int_to_ptr.vmem [resolvable:$true] %s146
          %149 = dma.hbm_to_vmem [thread:$0]  %s144, 128, %s147, %s134
        $region20: #{tpu_custom_call.1} parent=15 // pred_fallthru
          _
        // Predicated region
        $region21: #{tpu_custom_call.1} parent=15 // pred_check
          %p150 = pneg %p79
        $region22: #{tpu_custom_call.1} parent=15 // pred_check_branch
          %152 = sbr.rel (%p150) target = $region24
        $region23: #{tpu_custom_call.1} parent=15 // pred_region
          %s153 = sand.u32 %s69, 1
          %s154 = scalar_lea.sflag [#allocation7], %s153
          %s155 = sand.u32 %s69, 1
          %s156 = smul.addr %s155, 32
          %s157 = scalar_lea.vmem [#allocation6], %s156
          %s159 = ssub.s32 512, 512
          %160 = vsyncadd %s154, %s159
          %s161 = smul.addr %s25, 4
          %s162 = smul.addr %s24, 8
          %s163 = sadd.s32 %s161, %s162
          %s164 = smul.addr %s163, 128
          %s165 = scalar_lea.hbm %s1, %s164
          %s167 = sshll.u32 %s157, 4
          %s168 = int_to_ptr.vmem [resolvable:$true] %s167
          %170 = dma.hbm_to_vmem [thread:$0]  %s165, 512, %s168, %s154
        $region24: #{tpu_custom_call.1} parent=15 // pred_fallthru
          _
      $region16: #{tpu_custom_call.1} parent=5 // pred_fallthru
        _
      %p171 = scmp.le.s32.totalorder 1, %s17
      %p172 = scmp.lt.s32.totalorder %s17, 5
      %p173 = pnand %p171, %p172
      %p174 = pneg %p173
      // Predicated region
      $region25: #{tpu_custom_call.1} parent=5 // pred_check
        _
      $region26: #{tpu_custom_call.1} parent=5 // pred_check_branch
        %176 = sbr.rel (%p173) target = $region28
      $region27: #{tpu_custom_call.1} parent=5 // pred_region
        %s177 = ssub.s32 %s17, 1
        %s178 = sand.u32 %s44, 1
        %s179 = scalar_lea.sflag [#allocation4], %s178
        %s180 = sand.u32 %s44, 1
        %s181 = smul.addr %s180, 8
        %s182 = scalar_lea.vmem [#allocation3], %s181
        // Predicated region
        $region29: #{tpu_custom_call.1} parent=27 // pred_check
          %p183 = pneg %p57
        $region30: #{tpu_custom_call.1} parent=27 // pred_check_branch
          %185 = sbr.rel (%p183) target = $region32
        $region31: #{tpu_custom_call.1} parent=27 // pred_region
          %186 = dma.done %s179, 128
        $region32: #{tpu_custom_call.1} parent=27 // pred_fallthru
          _
        %s187 = sand.u32 %s72, 1
        %s188 = scalar_lea.sflag [#allocation7], %s187
        %s189 = sand.u32 %s72, 1
        %s190 = smul.addr %s189, 32
        %s191 = scalar_lea.vmem [#allocation6], %s190
        // Predicated region
        $region33: #{tpu_custom_call.1} parent=27 // pred_check
          %p192 = pneg %p85
        $region34: #{tpu_custom_call.1} parent=27 // pred_check_branch
          %194 = sbr.rel (%p192) target = $region36
        $region35: #{tpu_custom_call.1} parent=27 // pred_region
          %195 = dma.done %s188, 512
        $region36: #{tpu_custom_call.1} parent=27 // pred_fallthru
          _
        %s196 = sand.u32 %s44, 1
        %s197 = scalar_lea.sflag [#allocation4], %s196
        %s198 = sand.u32 %s44, 1
        %s199 = smul.addr %s198, 8
        %s200 = scalar_lea.vmem [#allocation3], %s199
        %p201 = pneg %p57
        %p202 = pneg %p54
        %s203 = sand.u32 %s72, 1
        %s204 = scalar_lea.sflag [#allocation7], %s203
        %s205 = sand.u32 %s72, 1
        %s206 = smul.addr %s205, 32
        %s207 = scalar_lea.vmem [#allocation6], %s206
        %p208 = pneg %p85
        %p209 = pneg %p82
        %p210 = pneg %p111
        %p211 = pneg %p108
        %s212 = sand.u32 %s98, 1
        %s213 = scalar_lea.sflag [#allocation5], %s212
        %s214 = sand.u32 %s98, 1
        %s215 = scalar_lea.vmem [#allocation8], %s214
        %p216 = scmp.eq.s32.totalorder %s27, 0
        // Predicated region
        $region37: #{tpu_custom_call.1} parent=27 // pred_check
          %p217 = pneg %p216
        $region38: #{tpu_custom_call.1} parent=27 // pred_check_branch
          %219 = sbr.rel (%p217) target = $region40
        $region39: #{tpu_custom_call.1} parent=27 // pred_region
          %220 = vst [vmem:[%s215] sm:$0x1] 0.0
        $region40: #{tpu_custom_call.1} parent=27 // pred_fallthru
          _
        %v221 = vld [vmem:[%s191] sm:$0xff]
        %v222 = vld [vmem:[%s191 + $0x8] sm:$0xff]
        %v223 = vld [vmem:[%s191 + $0x10] sm:$0xff]
        %v224 = vld [vmem:[%s191 + $0x18] sm:$0xff]
        %v225 = vmax.f32 %v221, %v223
        %v226 = vmax.f32 %v222, %v224
        %227 = vxpose.xlu0.b32.start [1/16] %v225, 128
        %228 = vxpose.xlu0.b32.cont [2/16] 0.0, 128
        %229 = vxpose.xlu0.b32.cont [3/16] 0.0, 128
        %230 = vxpose.xlu0.b32.cont [4/16] 0.0, 128
        %231 = vxpose.xlu0.b32.cont [5/16] 0.0, 128
        %232 = vxpose.xlu0.b32.cont [6/16] 0.0, 128
        %233 = vxpose.xlu0.b32.cont [7/16] 0.0, 128
        %234 = vxpose.xlu0.b32.cont [8/16] 0.0, 128
        %235 = vxpose.xlu0.b32.cont [9/16] 0.0, 128
        %236 = vxpose.xlu0.b32.cont [10/16] 0.0, 128
        %237 = vxpose.xlu0.b32.cont [11/16] 0.0, 128
        %238 = vxpose.xlu0.b32.cont [12/16] 0.0, 128
        %239 = vxpose.xlu0.b32.cont [13/16] 0.0, 128
        %240 = vxpose.xlu0.b32.cont [14/16] 0.0, 128
        %241 = vxpose.xlu0.b32.cont [15/16] 0.0, 128
        %242 = vxpose.xlu0.b32.end [16/16] 0.0, 128
        %v243 = vpop.trf.xlu0
        %v244 = vpop.trf.xlu0
        %v245 = vpop.trf.xlu0
        %v246 = vpop.trf.xlu0
        %v247 = vpop.trf.xlu0
        %v248 = vpop.trf.xlu0
        %v249 = vpop.trf.xlu0
        %v250 = vpop.trf.xlu0
        %v251 = vpop.trf.xlu0
        %v252 = vpop.trf.xlu0
        %v253 = vpop.trf.xlu0
        %v254 = vpop.trf.xlu0
        %v255 = vpop.trf.xlu0
        %v256 = vpop.trf.xlu0
        %v257 = vpop.trf.xlu0
        %v258 = vpop.trf.xlu0
        %259 = vxpose.xlu0.b32.start [1/16] %v226, 128
        %260 = vxpose.xlu0.b32.cont [2/16] 0.0, 128
        %261 = vxpose.xlu0.b32.cont [3/16] 0.0, 128
        %262 = vxpose.xlu0.b32.cont [4/16] 0.0, 128
        %263 = vxpose.xlu0.b32.cont [5/16] 0.0, 128
        %264 = vxpose.xlu0.b32.cont [6/16] 0.0, 128
        %265 = vxpose.xlu0.b32.cont [7/16] 0.0, 128
        %266 = vxpose.xlu0.b32.cont [8/16] 0.0, 128
        %267 = vxpose.xlu0.b32.cont [9/16] 0.0, 128
        %268 = vxpose.xlu0.b32.cont [10/16] 0.0, 128
        %269 = vxpose.xlu0.b32.cont [11/16] 0.0, 128
        %270 = vxpose.xlu0.b32.cont [12/16] 0.0, 128
        %271 = vxpose.xlu0.b32.cont [13/16] 0.0, 128
        %272 = vxpose.xlu0.b32.cont [14/16] 0.0, 128
        %273 = vxpose.xlu0.b32.cont [15/16] 0.0, 128
        %274 = vxpose.xlu0.b32.end [16/16] 0.0, 128
        %v275 = vpop.trf.xlu0
        %v276 = vpop.trf.xlu0
        %v277 = vpop.trf.xlu0
        %v278 = vpop.trf.xlu0
        %v279 = vpop.trf.xlu0
        %v280 = vpop.trf.xlu0
        %v281 = vpop.trf.xlu0
        %v282 = vpop.trf.xlu0
        %v283 = vpop.trf.xlu0
        %v284 = vpop.trf.xlu0
        %v285 = vpop.trf.xlu0
        %v286 = vpop.trf.xlu0
        %v287 = vpop.trf.xlu0
        %v288 = vpop.trf.xlu0
        %v289 = vpop.trf.xlu0
        %v290 = vpop.trf.xlu0
        %vm291 = vcmask 64512
        %292 = vst.msk [vmem:[#allocation2] sm:$0xff] %vm291, %v243
        %293 = vst.msk [vmem:[#allocation2 + $0x8] sm:$0xff] %vm291, %v244
        %294 = vst.msk [vmem:[#allocation2 + $0x10] sm:$0xff] %vm291, %v245
        %295 = vst.msk [vmem:[#allocation2 + $0x18] sm:$0xff] %vm291, %v246
        %296 = vst.msk [vmem:[#allocation2 + $0x20] sm:$0xff] %vm291, %v247
        %297 = vst.msk [vmem:[#allocation2 + $0x28] sm:$0xff] %vm291, %v248
        %298 = vst.msk [vmem:[#allocation2 + $0x30] sm:$0xff] %vm291, %v249
        %299 = vst.msk [vmem:[#allocation2 + $0x38] sm:$0xff] %vm291, %v250
        %300 = vst.msk [vmem:[#allocation2 + $0x40] sm:$0xff] %vm291, %v251
        %301 = vst.msk [vmem:[#allocation2 + $0x48] sm:$0xff] %vm291, %v252
        %302 = vst.msk [vmem:[#allocation2 + $0x50] sm:$0xff] %vm291, %v253
        %303 = vst.msk [vmem:[#allocation2 + $0x58] sm:$0xff] %vm291, %v254
        %304 = vst.msk [vmem:[#allocation2 + $0x60] sm:$0xff] %vm291, %v255
        %305 = vst.msk [vmem:[#allocation2 + $0x68] sm:$0xff] %vm291, %v256
        %306 = vst.msk [vmem:[#allocation2 + $0x70] sm:$0xff] %vm291, %v257
        %307 = vst.msk [vmem:[#allocation2 + $0x78] sm:$0xff] %vm291, %v258
        %308 = vst.msk [vmem:[#allocation2 + $0x80] sm:$0xff] %vm291, %v275
        %309 = vst.msk [vmem:[#allocation2 + $0x88] sm:$0xff] %vm291, %v276
        %310 = vst.msk [vmem:[#allocation2 + $0x90] sm:$0xff] %vm291, %v277
        %311 = vst.msk [vmem:[#allocation2 + $0x98] sm:$0xff] %vm291, %v278
        %312 = vst.msk [vmem:[#allocation2 + $0xa0] sm:$0xff] %vm291, %v279
        %313 = vst.msk [vmem:[#allocation2 + $0xa8] sm:$0xff] %vm291, %v280
        %314 = vst.msk [vmem:[#allocation2 + $0xb0] sm:$0xff] %vm291, %v281
        %315 = vst.msk [vmem:[#allocation2 + $0xb8] sm:$0xff] %vm291, %v282
        %316 = vst.msk [vmem:[#allocation2 + $0xc0] sm:$0xff] %vm291, %v283
        %317 = vst.msk [vmem:[#allocation2 + $0xc8] sm:$0xff] %vm291, %v284
        %318 = vst.msk [vmem:[#allocation2 + $0xd0] sm:$0xff] %vm291, %v285
        %319 = vst.msk [vmem:[#allocation2 + $0xd8] sm:$0xff] %vm291, %v286
        %320 = vst.msk [vmem:[#allocation2 + $0xe0] sm:$0xff] %vm291, %v287
        %321 = vst.msk [vmem:[#allocation2 + $0xe8] sm:$0xff] %vm291, %v288
        %322 = vst.msk [vmem:[#allocation2 + $0xf0] sm:$0xff] %vm291, %v289
        %323 = vst.msk [vmem:[#allocation2 + $0xf8] sm:$0xff] %vm291, %v290
        %v324 = vld [vmem:[#allocation2] ss:$2 sm:$0xff]
        %s325 = scalar_lea.vmem [#allocation2], 16
        %v326 = vld [vmem:[%s325] ss:$2 sm:$0xff]
        %s327 = scalar_lea.vmem [#allocation2], 32
        %v328 = vld [vmem:[%s327] ss:$2 sm:$0xff]
        %s329 = scalar_lea.vmem [#allocation2], 48
        %v330 = vld [vmem:[%s329] ss:$2 sm:$0xff]
        %s331 = scalar_lea.vmem [#allocation2], 64
        %v332 = vld [vmem:[%s331] ss:$2 sm:$0xff]
        %s333 = scalar_lea.vmem [#allocation2], 80
        %v334 = vld [vmem:[%s333] ss:$2 sm:$0xff]
        %s335 = scalar_lea.vmem [#allocation2], 96
        %v336 = vld [vmem:[%s335] ss:$2 sm:$0xff]
        %s337 = scalar_lea.vmem [#allocation2], 112
        %v338 = vld [vmem:[%s337] ss:$2 sm:$0xff]
        %s339 = scalar_lea.vmem [#allocation2], 128
        %v340 = vld [vmem:[%s339] ss:$2 sm:$0xff]
        %s341 = scalar_lea.vmem [#allocation2], 144
        %v342 = vld [vmem:[%s341] ss:$2 sm:$0xff]
        %s343 = scalar_lea.vmem [#allocation2], 160
        %v344 = vld [vmem:[%s343] ss:$2 sm:$0xff]
        %s345 = scalar_lea.vmem [#allocation2], 176
        %v346 = vld [vmem:[%s345] ss:$2 sm:$0xff]
        %s347 = scalar_lea.vmem [#allocation2], 192
        %v348 = vld [vmem:[%s347] ss:$2 sm:$0xff]
        %s349 = scalar_lea.vmem [#allocation2], 208
        %v350 = vld [vmem:[%s349] ss:$2 sm:$0xff]
        %s351 = scalar_lea.vmem [#allocation2], 224
        %v352 = vld [vmem:[%s351] ss:$2 sm:$0xff]
        %s353 = scalar_lea.vmem [#allocation2], 240
        %v354 = vld [vmem:[%s353] ss:$2 sm:$0xff]
        %s355 = scalar_lea.vmem [#allocation2], 1
        %v356 = vld [vmem:[%s355] ss:$2 sm:$0xff]
        %s357 = scalar_lea.vmem [#allocation2], 17
        %v358 = vld [vmem:[%s357] ss:$2 sm:$0xff]
        %s359 = scalar_lea.vmem [#allocation2], 33
        %v360 = vld [vmem:[%s359] ss:$2 sm:$0xff]
        %s361 = scalar_lea.vmem [#allocation2], 49
        %v362 = vld [vmem:[%s361] ss:$2 sm:$0xff]
        %s363 = scalar_lea.vmem [#allocation2], 65
        %v364 = vld [vmem:[%s363] ss:$2 sm:$0xff]
        %s365 = scalar_lea.vmem [#allocation2], 81
        %v366 = vld [vmem:[%s365] ss:$2 sm:$0xff]
        %s367 = scalar_lea.vmem [#allocation2], 97
        %v368 = vld [vmem:[%s367] ss:$2 sm:$0xff]
        %s369 = scalar_lea.vmem [#allocation2], 113
        %v370 = vld [vmem:[%s369] ss:$2 sm:$0xff]
        %s371 = scalar_lea.vmem [#allocation2], 129
        %v372 = vld [vmem:[%s371] ss:$2 sm:$0xff]
        %s373 = scalar_lea.vmem [#allocation2], 145
        %v374 = vld [vmem:[%s373] ss:$2 sm:$0xff]
        %s375 = scalar_lea.vmem [#allocation2], 161
        %v376 = vld [vmem:[%s375] ss:$2 sm:$0xff]
        %s377 = scalar_lea.vmem [#allocation2], 177
        %v378 = vld [vmem:[%s377] ss:$2 sm:$0xff]
        %s379 = scalar_lea.vmem [#allocation2], 193
        %v380 = vld [vmem:[%s379] ss:$2 sm:$0xff]
        %s381 = scalar_lea.vmem [#allocation2], 209
        %v382 = vld [vmem:[%s381] ss:$2 sm:$0xff]
        %s383 = scalar_lea.vmem [#allocation2], 225
        %v384 = vld [vmem:[%s383] ss:$2 sm:$0xff]
        %s385 = scalar_lea.vmem [#allocation2], 241
        %v386 = vld [vmem:[%s385] ss:$2 sm:$0xff]
        %v387 = vmax.f32 %v324, %v356
        %v388 = vmax.f32 %v326, %v358
        %v389 = vmax.f32 %v328, %v360
        %v390 = vmax.f32 %v330, %v362
        %v391 = vmax.f32 %v332, %v364
        %v392 = vmax.f32 %v334, %v366
        %v393 = vmax.f32 %v336, %v368
        %v394 = vmax.f32 %v338, %v370
        %v395 = vmax.f32 %v340, %v372
        %v396 = vmax.f32 %v342, %v374
        %v397 = vmax.f32 %v344, %v376
        %v398 = vmax.f32 %v346, %v378
        %v399 = vmax.f32 %v348, %v380
        %v400 = vmax.f32 %v350, %v382
        %v401 = vmax.f32 %v352, %v384
        %v402 = vmax.f32 %v354, %v386
        %403 = vxpose.xlu0.b32.start [1/16] %v387, 128
        %404 = vxpose.xlu0.b32.cont [2/16] %v388, 128
        %405 = vxpose.xlu0.b32.cont [3/16] %v389, 128
        %406 = vxpose.xlu0.b32.cont [4/16] %v390, 128
        %407 = vxpose.xlu0.b32.cont [5/16] %v391, 128
        %408 = vxpose.xlu0.b32.cont [6/16] %v392, 128
        %409 = vxpose.xlu0.b32.cont [7/16] %v393, 128
        %410 = vxpose.xlu0.b32.cont [8/16] %v394, 128
        %411 = vxpose.xlu0.b32.cont [9/16] %v395, 128
        %412 = vxpose.xlu0.b32.cont [10/16] %v396, 128
        %413 = vxpose.xlu0.b32.cont [11/16] %v397, 128
        %414 = vxpose.xlu0.b32.cont [12/16] %v398, 128
        %415 = vxpose.xlu0.b32.cont [13/16] %v399, 128
        %416 = vxpose.xlu0.b32.cont [14/16] %v400, 128
        %417 = vxpose.xlu0.b32.cont [15/16] %v401, 128
        %418 = vxpose.xlu0.b32.end [16/16] %v402, 128
        %v419 = vpop.trf.xlu0
        %v420 = vpop.trf.xlu0
        %v421 = vpop.trf.xlu0
        %v422 = vpop.trf.xlu0
        %v423 = vpop.trf.xlu0
        %v424 = vpop.trf.xlu0
        %v425 = vpop.trf.xlu0
        %v426 = vpop.trf.xlu0
        %v427 = vpop.trf.xlu0
        %v428 = vpop.trf.xlu0
        %v429 = vpop.trf.xlu0
        %v430 = vpop.trf.xlu0
        %v431 = vpop.trf.xlu0
        %v432 = vpop.trf.xlu0
        %v433 = vpop.trf.xlu0
        %v434 = vpop.trf.xlu0
        %v435 = vmul.f32 %v419, 0.5
        %v436 = vld [vmem:[%s182] sm:$0xff]
        %v437 = vsub.f32 %v436, %v435
        %v438 = vand.u32 2147483647, %v437
        %vm439 = vcmp.lt.f32.partialorder %v438, 1.0
        %v440 = vmul.f32 %v437, 0.5
        %v441 = vmul.f32 %v440, %v437
        %v442 = vsub.f32 %v438, 0.5
        %v443 = vsel %vm439, %v441, %v442
        %444 = vadd.xlane.f32.xlu0 %v443
        %v445 = vpop.xlane.xlu0 %444
        %v446 = vrot.slane %v445, 4
        %v447 = vadd.f32 %v445, %v446
        %v448 = vrot.slane %v447, 2
        %v449 = vadd.f32 %v447, %v448
        %v450 = vrot.slane %v449, 1
        %v451 = vadd.f32 %v449, %v450
        %s452 = vtos %v451
        %453 = vadd.xlane.f32.xlu0 %v435
        %v454 = vpop.xlane.xlu0 %453
        %v455 = vrot.slane %v454, 4
        %v456 = vadd.f32 %v454, %v455
        %v457 = vrot.slane %v456, 2
        %v458 = vadd.f32 %v456, %v457
        %v459 = vrot.slane %v458, 1
        %v460 = vadd.f32 %v458, %v459
        %s461 = vtos %v460
        %v462 = vmul.f32 %v435, %v435
        %463 = vadd.xlane.f32.xlu0 %v462
        %v464 = vpop.xlane.xlu0 %463
        %v465 = vrot.slane %v464, 4
        %v466 = vadd.f32 %v464, %v465
        %v467 = vrot.slane %v466, 2
        %v468 = vadd.f32 %v466, %v467
        %v469 = vrot.slane %v468, 1
        %v470 = vadd.f32 %v468, %v469
        %s471 = vtos %v470
        %v472 = vlaneseq
        %v473 = vand.u32 %v472, 127
        %vm474 = vcmp.eq.s32.totalorder %v473, 0
        %v475 = vstv %s452
        %v476 = vsel %vm474, %v475, 0.0
        %vm477 = vcmp.eq.s32.totalorder %v473, 1
        %v478 = vstv %s461
        %v479 = vsel %vm477, %v478, %v476
        %vm480 = vcmp.eq.s32.totalorder %v473, 2
        %v481 = vstv %s471
        %v482 = vsel %vm480, %v481, %v479
        %v483 = vld [vmem:[%s215] sm:$0x1]
        %v484 = vadd.f32 %v483, %v482
        %485 = vst [vmem:[%s215] sm:$0x1] %v484
        %s486 = sand.u32 %s98, 1
        %s487 = scalar_lea.sflag [#allocation5], %s486
        %s488 = sand.u32 %s98, 1
        %s489 = scalar_lea.vmem [#allocation8], %s488
        // Predicated region
        $region41: #{tpu_custom_call.1} parent=27 // pred_check
          %p490 = pneg %p108
        $region42: #{tpu_custom_call.1} parent=27 // pred_check_branch
          %492 = sbr.rel (%p490) target = $region44
        $region43: #{tpu_custom_call.1} parent=27 // pred_region
          %s494 = ssub.s32 16, 16
          %495 = vsyncadd %s487, %s494
          %s496 = smul.addr %s26, 16
          %s497 = scalar_lea.hbm %s2, %s496
          %s499 = sshll.u32 %s489, 4
          %s500 = int_to_ptr.vmem [resolvable:$true] %s499
          %502 = dma.vmem_to_hbm [thread:$0]  %s500, 16, %s497, %s487
        $region44: #{tpu_custom_call.1} parent=27 // pred_fallthru
          _
      $region28: #{tpu_custom_call.1} parent=5 // pred_fallthru
        _
      %p503 = scmp.le.s32.totalorder 2, %s17
      // Predicated region
      $region45: #{tpu_custom_call.1} parent=5 // pred_check
        %p504 = pneg %p503
      $region46: #{tpu_custom_call.1} parent=5 // pred_check_branch
        %506 = sbr.rel (%p504) target = $region48
      $region47: #{tpu_custom_call.1} parent=5 // pred_region
        %s507 = ssub.s32 %s17, 2
        // Predicated region
        $region49: #{tpu_custom_call.1} parent=47 // pred_check
          %p508 = pneg %p114
        $region50: #{tpu_custom_call.1} parent=47 // pred_check_branch
          %510 = sbr.rel (%p508) target = $region52
        $region51: #{tpu_custom_call.1} parent=47 // pred_region
          %s511 = sand.u32 %s99, 1
          %s512 = scalar_lea.sflag [#allocation5], %s511
          %s513 = sand.u32 %s99, 1
          %s514 = scalar_lea.vmem [#allocation8], %s513
          %515 = dma.done %s512, 16
        $region52: #{tpu_custom_call.1} parent=47 // pred_fallthru
          _
      $region48: #{tpu_custom_call.1} parent=5 // pred_fallthru
        _
    $region6: #{tpu_custom_call.1} parent=1 // loop_footer
      %s21 = sadd.s32 1, %s17
    $region7: #{tpu_custom_call.1} parent=1 // loop_footer_branch
      %16 = sbr.rel target = $region3
    $region8: #{tpu_custom_call.1} parent=1 // loop_exit
      _
    %516 = vsyncpa [#allocation4], 1
    %s517 = scalar_lea.sflag [#allocation4], 1
    %518 = vsyncpa %s517, 1
    %519 = vsyncpa [#allocation7], 1
    %s520 = scalar_lea.sflag [#allocation7], 1
    %521 = vsyncpa %s520, 1
    %522 = vsyncpa [#allocation5], 1
    %s523 = scalar_lea.sflag [#allocation5], 1
    %524 = vsyncpa %s523, 1

</llo_original>
